<compile_context>
chip_gen: v7x
topology: tpu7x:2x2x1
jax: 0.10.0
libtpu: 0.0.40
codegen_flags: <defaults>
</compile_context>

<pallas_src>
import functools

import jax
import jax.numpy as jnp
import numpy as np
from jax.experimental import pallas as pl
from jax.experimental.pallas import tpu as pltpu

EPS = 0.5 ** 16  # matches torch.log(x + 0.5 ** 16)


def td_shaper_kernel(x_ref, feat_ref, w1f_ref, w1e_ref, w2_ref, pool_ref,
                     b1_ref, b2_ref, out_ref, *, frame_size, frames_per_elem, group):
    # x_ref:    (frame_size, L)        samples-in-frame on sublanes, (elem,frame) on lanes
    # feat_ref: (feature_dim, L)
    # w1f_ref:  (2*frame_size, feature_dim)   [cur taps ; prev taps] stacked on output axis
    # w1e_ref:  (2*frame_size, pool_out)      env weights with centering/mean folded in
    # w2_ref:   (2*frame_size, frame_size)
    # pool_ref: (pool_out, frame_size)        avg-pool matrix
    # b1_ref/b2_ref: (frame_size, 1)
    x = x_ref[...]
    feat = feat_ref[...]
    n_lanes = x.shape[-1]

    # ---- envelope: abs -> avg_pool (matmul) -> log (centering folded into w1e) ----
    xa = jnp.abs(x)
    pooled = jnp.dot(pool_ref[...], xa, preferred_element_type=jnp.float32)   # (p, L)
    env_pre = jnp.log(pooled + EPS)

    # ---- first-frame-of-element mask (chunk = `group` whole batch elements) ----
    lane = jax.lax.broadcasted_iota(jnp.int32, (1, n_lanes), 1)
    is_first = lane == 0
    for g in range(1, group):                      # small compile-time unroll, no int div
        is_first = jnp.logical_or(is_first, lane == g * frames_per_elem)

    def shift_prev(a):                             # a: (frame_size, L)
        return jnp.where(is_first, 0.0, pltpu.roll(a, shift=1, axis=1))

    # ---- layer 1: stacked cur/prev taps, roll only the bottom half of the output ----
    z1 = (jnp.dot(w1f_ref[...], feat, preferred_element_type=jnp.float32)
          + jnp.dot(w1e_ref[...], env_pre, preferred_element_type=jnp.float32))  # (2fs, L)
    a1 = z1[:frame_size, :] + shift_prev(z1[frame_size:, :]) + b1_ref[...]
    a1 = jnp.where(a1 >= 0, a1, 0.2 * a1)                                         # leaky_relu(0.2)

    # ---- layer 2: same structure, then exp ----
    z2 = jnp.dot(w2_ref[...], a1, preferred_element_type=jnp.float32)             # (2fs, L)
    alpha = jnp.exp(z2[:frame_size, :] + shift_prev(z2[frame_size:, :]) + b2_ref[...])

    # ---- temporal shaping (lane-dense store) ----
    out_ref[...] = alpha * x


def td_shaper_forward(x, features, params, *, frame_size, avg_pool_k, target_lanes=1024):
    """x: (B, 1, num_samples) f32; features: (B, num_frames, feature_dim) f32."""
    B, _, num_samples = x.shape
    num_frames = features.shape[1]
    feature_dim = features.shape[2]
    assert num_samples == num_frames * frame_size
    assert frame_size % avg_pool_k == 0
    pool_out = frame_size // avg_pool_k

    # Pad frames per element to a multiple of 128 (lane-dense stores) and choose how many
    # whole batch elements go into each grid step (target ~1024 lanes per step).
    f_pad = ((num_frames + 127) // 128) * 128
    group = max(1, min(B, target_lanes // f_pad))
    if B >= 2 and (B + group - 1) // group < 2:
        group = max(1, (B + 1) // 2)               # v7x: keep >= 2 parallel grid blocks
    b_pad = ((B + group - 1) // group) * group
    num_chunks = b_pad // group
    lanes = group * f_pad

    x_fr = x.reshape(B, num_frames, frame_size).astype(jnp.float32)
    feat = features.astype(jnp.float32)
    if (b_pad, f_pad) != (B, num_frames):
        x_fr = jnp.pad(x_fr, ((0, b_pad - B), (0, f_pad - num_frames), (0, 0)))
        feat = jnp.pad(feat, ((0, b_pad - B), (0, f_pad - num_frames), (0, 0)))

    # Layout plumbing: channels -> sublanes, (batch, frames) flattened -> lanes.
    x_t = jnp.transpose(x_fr, (2, 0, 1)).reshape(frame_size, b_pad * f_pad)
    feat_t = jnp.transpose(feat, (2, 0, 1)).reshape(feature_dim, b_pad * f_pad)

    # ---- trace-time weight repack ----
    w1f, w1t, w2 = params["w1f"], params["w1t"], params["w2"]            # (out, in, 2)
    b1 = (params["b1f"] + params["b1t"]).reshape(frame_size, 1).astype(jnp.float32)
    b2 = params["b2"].reshape(frame_size, 1).astype(jnp.float32)

    def fold_env(w):
        # env = [env_pre - avg ; avg] with avg = mean over pool_out rows; fold into weights.
        w_main = w[:, :pool_out]
        w_avg = w[:, pool_out:pool_out + 1]
        return w_main + (w_avg - jnp.sum(w_main, axis=1, keepdims=True)) / pool_out

    # Stack the current-frame tap (kernel index 1) and previous-frame tap (kernel index 0)
    # along the OUTPUT axis; the kernel rolls/masks only the bottom frame_size rows.
    w1_feat = jnp.concatenate([w1f[:, :, 1], w1f[:, :, 0]], axis=0).astype(jnp.float32)
    w1_env = jnp.concatenate([fold_env(w1t[:, :, 1]),
                              fold_env(w1t[:, :, 0])], axis=0).astype(jnp.float32)
    w2_stk = jnp.concatenate([w2[:, :, 1], w2[:, :, 0]], axis=0).astype(jnp.float32)

    # Avg-pool matrix: P[j, i] = 1/k where i // k == j  ->  pooled = P @ |x_frames|
    pool_mat = (jnp.arange(frame_size)[None, :] // avg_pool_k
                == jnp.arange(pool_out)[:, None]).astype(jnp.float32) / avg_pool_k

    kernel = functools.partial(td_shaper_kernel, frame_size=frame_size,
                               frames_per_elem=f_pad, group=group)

    y_t = pl.pallas_call(
        kernel,
        out_shape=jax.ShapeDtypeStruct((frame_size, b_pad * f_pad), jnp.float32),
        grid=(num_chunks,),
        in_specs=[
            pl.BlockSpec((frame_size, lanes), lambda i: (0, i)),
            pl.BlockSpec((feature_dim, lanes), lambda i: (0, i)),
            pl.BlockSpec((2 * frame_size, feature_dim), lambda i: (0, 0)),
            pl.BlockSpec((2 * frame_size, pool_out), lambda i: (0, 0)),
            pl.BlockSpec((2 * frame_size, frame_size), lambda i: (0, 0)),
            pl.BlockSpec((pool_out, frame_size), lambda i: (0, 0)),
            pl.BlockSpec((frame_size, 1), lambda i: (0, 0)),
            pl.BlockSpec((frame_size, 1), lambda i: (0, 0)),
        ],
        out_specs=pl.BlockSpec((frame_size, lanes), lambda i: (0, i)),
        compiler_params=pltpu.CompilerParams(dimension_semantics=("parallel",)),
    )(x_t, feat_t, w1_feat, w1_env, w2_stk, pool_mat, b1, b2)

    # Back to (B, 1, num_samples); reshape after the transpose is metadata-only.
    y = jnp.transpose(y_t.reshape(frame_size, b_pad, f_pad), (1, 2, 0))
    return y[:B, :num_frames, :].reshape(B, 1, num_samples)


# ---------------- pure-JAX reference (mirrors the PyTorch forward) ----------------
def td_shaper_reference(x, features, params, *, frame_size, avg_pool_k):
    B, _, num_samples = x.shape
    num_frames = features.shape[1]
    env_dim = frame_size // avg_pool_k + 1

    # envelope_transform
    xa = jnp.abs(x)
    pooled = jnp.mean(xa.reshape(B, 1, num_samples // avg_pool_k, avg_pool_k), axis=-1)
    logp = jnp.log(pooled + EPS)
    e = logp.reshape(B, num_frames, env_dim - 1)
    avg = jnp.mean(e, axis=-1, keepdims=True)
    tenv = jnp.concatenate([e - avg, avg], axis=-1)                   # (B, F, env_dim)

    def conv1d_k2_leftpad(inp, w, b):
        # inp: (B, C_in, F); w: (C_out, C_in, 2); b: (C_out,)
        cur = inp
        prev = jnp.pad(inp, ((0, 0), (0, 0), (1, 0)))[:, :, :-1]
        return (jnp.einsum("oc,bcf->bof", w[:, :, 1], cur)
                + jnp.einsum("oc,bcf->bof", w[:, :, 0], prev)
                + b[None, :, None])

    f = jnp.transpose(features, (0, 2, 1))                            # (B, feat, F)
    t = jnp.transpose(tenv, (0, 2, 1))                                # (B, env, F)
    alpha = (conv1d_k2_leftpad(f, params["w1f"], params["b1f"])
             + conv1d_k2_leftpad(t, params["w1t"], params["b1t"]))
    alpha = jnp.where(alpha >= 0, alpha, 0.2 * alpha)
    alpha = jnp.exp(conv1d_k2_leftpad(alpha, params["w2"], params["b2"]))
    alpha = jnp.transpose(alpha, (0, 2, 1))                           # (B, F, frame_size)

    y = alpha * x.reshape(B, num_frames, frame_size)
    return y.reshape(B, 1, num_samples)


if __name__ == "__main__":
    # Small, module-consistent shapes. num_frames=100 / batch=3 deliberately exercise the
    # frame padding (100 -> 128 lanes/element), batch padding, and the 2-chunk parallel grid.
    feature_dim = 32
    frame_size = 16
    avg_pool_k = 4
    num_frames = 100
    batch = 3
    num_samples = num_frames * frame_size
    env_dim = frame_size // avg_pool_k + 1

    key = jax.random.PRNGKey(0)
    k_x, k_f, k1, k2, k3, k4, k5, k6 = jax.random.split(key, 8)

    x = jax.random.normal(k_x, (batch, 1, num_samples), dtype=jnp.float32)
    features = jax.random.normal(k_f, (batch, num_frames, feature_dim), dtype=jnp.float32)

    # Deterministic synthetic conv weights (shapes from nn.Conv1d(..., kernel_size=2)).
    params = {
        "w1f": 0.05 * jax.random.normal(k1, (frame_size, feature_dim, 2), dtype=jnp.float32),
        "b1f": 0.05 * jax.random.normal(k2, (frame_size,), dtype=jnp.float32),
        "w1t": 0.05 * jax.random.normal(k3, (frame_size, env_dim, 2), dtype=jnp.float32),
        "b1t": 0.05 * jax.random.normal(k4, (frame_size,), dtype=jnp.float32),
        "w2": 0.05 * jax.random.normal(k5, (frame_size, frame_size, 2), dtype=jnp.float32),
        "b2": 0.05 * jax.random.normal(k6, (frame_size,), dtype=jnp.float32),
    }

    fwd = jax.jit(functools.partial(td_shaper_forward,
                                    frame_size=frame_size, avg_pool_k=avg_pool_k))
    y = jax.block_until_ready(fwd(x, features, params))

    y_ref = jax.block_until_ready(
        td_shaper_reference(x, features, params, frame_size=frame_size, avg_pool_k=avg_pool_k))

    assert y.shape == (batch, 1, num_samples)
    np.testing.assert_allclose(np.asarray(y), np.asarray(y_ref), rtol=1e-5, atol=1e-5)
    print("KERNEL_OK")
</pallas_src>

<mosaic_0001>
module attributes {stable_mosaic.version = 11 : i64} {
  func.func @td_shaper_kernel(%arg0: i32, %arg1: memref<16x256xf32, #tpu.memory_space<vmem>>, %arg2: memref<32x256xf32, #tpu.memory_space<vmem>>, %arg3: memref<32x32xf32, #tpu.memory_space<vmem>>, %arg4: memref<32x4xf32, #tpu.memory_space<vmem>>, %arg5: memref<32x16xf32, #tpu.memory_space<vmem>>, %arg6: memref<4x16xf32, #tpu.memory_space<vmem>>, %arg7: memref<16x1xf32, #tpu.memory_space<vmem>>, %arg8: memref<16x1xf32, #tpu.memory_space<vmem>>, %arg9: memref<16x256xf32, #tpu.memory_space<vmem>>) attributes {dimension_semantics = [#tpu.dimension_semantics<parallel>], iteration_bounds = array<i64: 2>, scalar_prefetch = 0 : i64, scratch_operands = 0 : i64, tpu.core_type = #tpu.core_type<tc>, window_params = [{transform_indices = @transform_0, window_bounds = array<i64: 16, 256>}, {transform_indices = @transform_1, window_bounds = array<i64: 32, 256>}, {pipeline_mode = #tpu.pipeline_mode<synchronous>, transform_indices = @transform_2, window_bounds = array<i64: 32, 32>}, {pipeline_mode = #tpu.pipeline_mode<synchronous>, transform_indices = @transform_3, window_bounds = array<i64: 32, 4>}, {pipeline_mode = #tpu.pipeline_mode<synchronous>, transform_indices = @transform_4, window_bounds = array<i64: 32, 16>}, {pipeline_mode = #tpu.pipeline_mode<synchronous>, transform_indices = @transform_5, window_bounds = array<i64: 4, 16>}, {pipeline_mode = #tpu.pipeline_mode<synchronous>, transform_indices = @transform_6, window_bounds = array<i64: 16, 1>}, {pipeline_mode = #tpu.pipeline_mode<synchronous>, transform_indices = @transform_7, window_bounds = array<i64: 16, 1>}, {transform_indices = @transform_8, window_bounds = array<i64: 16, 256>}]} {
    %c0 = arith.constant 0 : index
    %c0_0 = arith.constant 0 : index
    %0 = vector.load %arg1[%c0, %c0_0] : memref<16x256xf32, #tpu.memory_space<vmem>>, vector<16x256xf32>
    %c0_1 = arith.constant 0 : index
    %c0_2 = arith.constant 0 : index
    %1 = vector.load %arg2[%c0_1, %c0_2] : memref<32x256xf32, #tpu.memory_space<vmem>>, vector<32x256xf32>
    %2 = math.absf %0 : vector<16x256xf32>
    %c0_3 = arith.constant 0 : index
    %c0_4 = arith.constant 0 : index
    %3 = vector.load %arg6[%c0_3, %c0_4] : memref<4x16xf32, #tpu.memory_space<vmem>>, vector<4x16xf32>
    %cst = arith.constant dense<0.000000e+00> : vector<4x256xf32>
    %4 = tpu.matmul %3, %2, %cst {dimension_numbers = #tpu.dot_dimension_numbers<[1], [0], [0], [1], [0, 0, 1, 1], [], []>} : vector<4x16xf32>, vector<16x256xf32>, vector<4x256xf32> -> vector<4x256xf32>
    %cst_5 = arith.constant 1.52587891E-5 : f32
    %5 = vector.broadcast %cst_5 : f32 to vector<4x256xf32>
    %6 = arith.addf %4, %5 : vector<4x256xf32>
    %7 = math.log %6 : vector<4x256xf32>
    %8 = tpu.iota {dimensions = array<i32: 1>} : vector<1x256xi32>
    %c0_i32 = arith.constant 0 : i32
    %9 = vector.broadcast %c0_i32 : i32 to vector<1x256xi32>
    %10 = arith.cmpi eq, %8, %9 : vector<1x256xi32>
    %c128_i32 = arith.constant 128 : i32
    %11 = vector.broadcast %c128_i32 : i32 to vector<1x256xi32>
    %12 = arith.cmpi eq, %8, %11 : vector<1x256xi32>
    %13 = arith.ori %10, %12 : vector<1x256xi1>
    %c0_6 = arith.constant 0 : index
    %c0_7 = arith.constant 0 : index
    %14 = vector.load %arg3[%c0_6, %c0_7] : memref<32x32xf32, #tpu.memory_space<vmem>>, vector<32x32xf32>
    %cst_8 = arith.constant dense<0.000000e+00> : vector<32x256xf32>
    %15 = tpu.matmul %14, %1, %cst_8 {dimension_numbers = #tpu.dot_dimension_numbers<[1], [0], [0], [1], [0, 0, 1, 1], [], []>} : vector<32x32xf32>, vector<32x256xf32>, vector<32x256xf32> -> vector<32x256xf32>
    %c0_9 = arith.constant 0 : index
    %c0_10 = arith.constant 0 : index
    %16 = vector.load %arg4[%c0_9, %c0_10] : memref<32x4xf32, #tpu.memory_space<vmem>>, vector<32x4xf32>
    %cst_11 = arith.constant dense<0.000000e+00> : vector<32x256xf32>
    %17 = tpu.matmul %16, %7, %cst_11 {dimension_numbers = #tpu.dot_dimension_numbers<[1], [0], [0], [1], [0, 0, 1, 1], [], []>} : vector<32x4xf32>, vector<4x256xf32>, vector<32x256xf32> -> vector<32x256xf32>
    %18 = arith.addf %15, %17 : vector<32x256xf32>
    %19 = vector.extract_strided_slice %18 {offsets = [0, 0], sizes = [16, 256], strides = [1, 1]} : vector<32x256xf32> to vector<16x256xf32>
    %20 = vector.extract_strided_slice %18 {offsets = [16, 0], sizes = [16, 256], strides = [1, 1]} : vector<32x256xf32> to vector<16x256xf32>
    %c1_i32 = arith.constant 1 : i32
    %21 = tpu.dynamic_rotate %20 by %c1_i32 dim 1 : vector<16x256xf32>, i32 -> vector<16x256xf32>
    %cst_12 = arith.constant 0.000000e+00 : f32
    %22 = vector.shape_cast %13 : vector<1x256xi1> to vector<1x256xi1>
    %23 = vector.broadcast %22 : vector<1x256xi1> to vector<16x256xi1>
    %24 = vector.broadcast %cst_12 : f32 to vector<16x256xf32>
    %25 = arith.select %23, %24, %21 : vector<16x256xi1>, vector<16x256xf32>
    %26 = arith.addf %19, %25 : vector<16x256xf32>
    %c0_13 = arith.constant 0 : index
    %c0_14 = arith.constant 0 : index
    %27 = vector.load %arg7[%c0_13, %c0_14] : memref<16x1xf32, #tpu.memory_space<vmem>>, vector<16x1xf32>
    %28 = vector.broadcast %27 : vector<16x1xf32> to vector<16x256xf32>
    %29 = arith.addf %26, %28 : vector<16x256xf32>
    %cst_15 = arith.constant 0.000000e+00 : f32
    %30 = vector.broadcast %cst_15 : f32 to vector<16x256xf32>
    %31 = arith.cmpf oge, %29, %30 : vector<16x256xf32>
    %cst_16 = arith.constant 2.000000e-01 : f32
    %32 = vector.broadcast %cst_16 : f32 to vector<16x256xf32>
    %33 = arith.mulf %32, %29 : vector<16x256xf32>
    %34 = arith.select %31, %29, %33 : vector<16x256xi1>, vector<16x256xf32>
    %c0_17 = arith.constant 0 : index
    %c0_18 = arith.constant 0 : index
    %35 = vector.load %arg5[%c0_17, %c0_18] : memref<32x16xf32, #tpu.memory_space<vmem>>, vector<32x16xf32>
    %cst_19 = arith.constant dense<0.000000e+00> : vector<32x256xf32>
    %36 = tpu.matmul %35, %34, %cst_19 {dimension_numbers = #tpu.dot_dimension_numbers<[1], [0], [0], [1], [0, 0, 1, 1], [], []>} : vector<32x16xf32>, vector<16x256xf32>, vector<32x256xf32> -> vector<32x256xf32>
    %37 = vector.extract_strided_slice %36 {offsets = [0, 0], sizes = [16, 256], strides = [1, 1]} : vector<32x256xf32> to vector<16x256xf32>
    %38 = vector.extract_strided_slice %36 {offsets = [16, 0], sizes = [16, 256], strides = [1, 1]} : vector<32x256xf32> to vector<16x256xf32>
    %c1_i32_20 = arith.constant 1 : i32
    %39 = tpu.dynamic_rotate %38 by %c1_i32_20 dim 1 : vector<16x256xf32>, i32 -> vector<16x256xf32>
    %cst_21 = arith.constant 0.000000e+00 : f32
    %40 = vector.shape_cast %13 : vector<1x256xi1> to vector<1x256xi1>
    %41 = vector.broadcast %40 : vector<1x256xi1> to vector<16x256xi1>
    %42 = vector.broadcast %cst_21 : f32 to vector<16x256xf32>
    %43 = arith.select %41, %42, %39 : vector<16x256xi1>, vector<16x256xf32>
    %44 = arith.addf %37, %43 : vector<16x256xf32>
    %c0_22 = arith.constant 0 : index
    %c0_23 = arith.constant 0 : index
    %45 = vector.load %arg8[%c0_22, %c0_23] : memref<16x1xf32, #tpu.memory_space<vmem>>, vector<16x1xf32>
    %46 = vector.broadcast %45 : vector<16x1xf32> to vector<16x256xf32>
    %47 = arith.addf %44, %46 : vector<16x256xf32>
    %48 = math.exp %47 : vector<16x256xf32>
    %49 = arith.mulf %48, %0 : vector<16x256xf32>
    %c0_24 = arith.constant 0 : index
    %c0_25 = arith.constant 0 : index
    %50 = vector.load %arg9[%c0_24, %c0_25] : memref<16x256xf32, #tpu.memory_space<vmem>>, vector<16x256xf32>
    tpu.vector_store %arg9[%c0_24, %c0_25], %49 {strides = array<i32>} : memref<16x256xf32, #tpu.memory_space<vmem>>, vector<16x256xf32>,
    return
  }
  func.func @transform_0(%arg0: i32) -> (i32, i32) {
    %c0_i32 = arith.constant 0 : i32
    %c0_i32_0 = arith.constant 0 : i32
    return %c0_i32, %arg0 : i32, i32
  }
  func.func @transform_1(%arg0: i32) -> (i32, i32) {
    %c0_i32 = arith.constant 0 : i32
    %c0_i32_0 = arith.constant 0 : i32
    return %c0_i32, %arg0 : i32, i32
  }
  func.func @transform_2(%arg0: i32) -> (i32, i32) {
    %c0_i32 = arith.constant 0 : i32
    %c0_i32_0 = arith.constant 0 : i32
    %c0_i32_1 = arith.constant 0 : i32
    return %c0_i32, %c0_i32_0 : i32, i32
  }
  func.func @transform_3(%arg0: i32) -> (i32, i32) {
    %c0_i32 = arith.constant 0 : i32
    %c0_i32_0 = arith.constant 0 : i32
    %c0_i32_1 = arith.constant 0 : i32
    return %c0_i32, %c0_i32_0 : i32, i32
  }
  func.func @transform_4(%arg0: i32) -> (i32, i32) {
    %c0_i32 = arith.constant 0 : i32
    %c0_i32_0 = arith.constant 0 : i32
    %c0_i32_1 = arith.constant 0 : i32
    return %c0_i32, %c0_i32_0 : i32, i32
  }
  func.func @transform_5(%arg0: i32) -> (i32, i32) {
    %c0_i32 = arith.constant 0 : i32
    %c0_i32_0 = arith.constant 0 : i32
    %c0_i32_1 = arith.constant 0 : i32
    return %c0_i32, %c0_i32_0 : i32, i32
  }
  func.func @transform_6(%arg0: i32) -> (i32, i32) {
    %c0_i32 = arith.constant 0 : i32
    %c0_i32_0 = arith.constant 0 : i32
    %c0_i32_1 = arith.constant 0 : i32
    return %c0_i32, %c0_i32_0 : i32, i32
  }
  func.func @transform_7(%arg0: i32) -> (i32, i32) {
    %c0_i32 = arith.constant 0 : i32
    %c0_i32_0 = arith.constant 0 : i32
    %c0_i32_1 = arith.constant 0 : i32
    return %c0_i32, %c0_i32_0 : i32, i32
  }
  func.func @transform_8(%arg0: i32) -> (i32, i32) {
    %c0_i32 = arith.constant 0 : i32
    %c0_i32_0 = arith.constant 0 : i32
    return %c0_i32, %arg0 : i32, i32
  }
}

</mosaic_0001>

<llo_original>
// kernel: td_shaper_forward.1
$region0: #{td_shaper_forward.1}
  #allocation0 [shape = 'u32[]', space=smem, size = 0x4, offset = 0x4, fixed_abs, tag = 'smem constant byte address 0x4 - core index']
  #allocation1 [shape = 'u32[144,128]{1,0:T(1,128)}', space=vmem, size = 0x12000, scoped, tag = 'internal scratch']
  %s0 = inlined_call_operand.vmem [shape: f32[16,512], index: 0, kind: input, shape index: {}]
  %s1 = inlined_call_operand.vmem [shape: f32[32,512], index: 1, kind: input, shape index: {}]
  %s2 = inlined_call_operand.vmem [shape: f32[32,32], index: 2, kind: input, shape index: {}]
  %s3 = inlined_call_operand.vmem [shape: f32[32,4], index: 3, kind: input, shape index: {}]
  %s4 = inlined_call_operand.vmem [shape: f32[32,16], index: 4, kind: input, shape index: {}]
  %s5 = inlined_call_operand.vmem [shape: f32[4,16], index: 5, kind: input, shape index: {}]
  %s6 = inlined_call_operand.vmem [shape: f32[16,1], index: 6, kind: input, shape index: {}]
  %s7 = inlined_call_operand.vmem [shape: f32[16,1], index: 7, kind: input, shape index: {}]
  %s8 = inlined_call_operand.vmem [shape: f32[16,512], index: 8, kind: output, shape index: {}]
  %s9 = sld [smem:[#allocation0]]
  $region130: #{td_shaper_forward.1} parent=0
    _
  %s11 = ssub.s32 1, %s9
  %s12 = scalar_select 0, %s11, %s9
  $region1: #{td_shaper_forward.1} parent=0
    #allocation2 [shape = 'u8[32768]{0}', space=vmem, size = 0x8000, scoped, tag = 'input window, operand 0']
    #allocation3 [shape = 'u8[65536]{0}', space=vmem, size = 0x10000, scoped, tag = 'input window, operand 1']
    #allocation4 [shape = 'u8[32768]{0}', space=vmem, size = 0x8000, scoped, tag = 'output window, operand 0']
    loop: start=0, step=1, limit=4
    $region2: #{td_shaper_forward.1} parent=1 // loop_pre_header
      _
    $region3: #{td_shaper_forward.1} parent=1 // loop_header
      %s14 = sphi 0, %s18
      %p15 = scmp.ge.s32.totalorder %s14, 4
      %s24 = sphi 0, %s26
      %s27 = sphi 0, %s24
      %s28 = sphi 0, %s27
      %s44 = sphi 0, %s28
      %s50 = sphi 0, %s52
      %s53 = sphi 0, %s50
      %s54 = sphi 0, %s53
      %s70 = sphi 0, %s54
      %s74 = sphi 0, %s74
      %s76 = sphi 0, %s74
      %s77 = sphi 0, %s76
      %s91 = sphi 0, %s77
      %s95 = sphi 0, %s95
      %s97 = sphi 0, %s95
      %s98 = sphi 0, %s97
      %s112 = sphi 0, %s98
      %s116 = sphi 0, %s116
      %s118 = sphi 0, %s116
      %s119 = sphi 0, %s118
      %s133 = sphi 0, %s119
      %s137 = sphi 0, %s137
      %s139 = sphi 0, %s137
      %s140 = sphi 0, %s139
      %s154 = sphi 0, %s140
      %s158 = sphi 0, %s158
      %s160 = sphi 0, %s158
      %s161 = sphi 0, %s160
      %s175 = sphi 0, %s161
      %s179 = sphi 0, %s179
      %s181 = sphi 0, %s179
      %s182 = sphi 0, %s181
      %s196 = sphi 0, %s182
      %s202 = sphi 0, %s204
      %s205 = sphi 0, %s202
      %s206 = sphi 0, %s205
      %s222 = sphi 0, %s206
    $region4: #{td_shaper_forward.1} parent=1 // loop_header_branch
      %17 = sbr.rel (%p15) target = $region8
    $region5: #{td_shaper_forward.1} parent=1 // loop_body
      %s19 = ssub.s32 %s14, 1
      %s20 = ssub.s32 %s14, 2
      %s21 = sadd.s32 %s14, 1
      %s22 = ssub.s32 %s14, %s21
      %p23 = scmp.eq.s32.totalorder %s22, 0
      %s25 = sadd.s32 %s24, 1
      %s26 = scalar_select %p23, %s24, %s25
      %p29 = pneg %p23
      %p30 = scmp.eq.s32.totalorder %s14, 1
      %p31 = por %p29, %p30
      %p32 = scmp.ne.s32.totalorder %s24, %s27
      %p33 = scmp.eq.s32.totalorder %s14, 0
      %p34 = por %p32, %p33
      %p35 = scmp.ne.s32.totalorder %s24, %s27
      %p36 = scmp.eq.s32.totalorder %s19, 1
      %p37 = por %p35, %p36
      %p38 = scmp.ne.s32.totalorder %s27, %s28
      %p39 = scmp.eq.s32.totalorder %s19, 0
      %p40 = por %p38, %p39
      %p41 = scmp.ne.s32.totalorder %s27, %s28
      %p42 = scmp.eq.s32.totalorder %s20, 1
      %p43 = por %p41, %p42
      %p45 = scmp.ne.s32.totalorder %s28, %s44
      %p46 = scmp.eq.s32.totalorder %s20, 0
      %p47 = por %p45, %p46
      %s48 = ssub.s32 %s14, %s21
      %p49 = scmp.eq.s32.totalorder %s48, 0
      %s51 = sadd.s32 %s50, 1
      %s52 = scalar_select %p49, %s50, %s51
      %p55 = pneg %p49
      %p56 = scmp.eq.s32.totalorder %s14, 1
      %p57 = por %p55, %p56
      %p58 = scmp.ne.s32.totalorder %s50, %s53
      %p59 = scmp.eq.s32.totalorder %s14, 0
      %p60 = por %p58, %p59
      %p61 = scmp.ne.s32.totalorder %s50, %s53
      %p62 = scmp.eq.s32.totalorder %s19, 1
      %p63 = por %p61, %p62
      %p64 = scmp.ne.s32.totalorder %s53, %s54
      %p65 = scmp.eq.s32.totalorder %s19, 0
      %p66 = por %p64, %p65
      %p67 = scmp.ne.s32.totalorder %s53, %s54
      %p68 = scmp.eq.s32.totalorder %s20, 1
      %p69 = por %p67, %p68
      %p71 = scmp.ne.s32.totalorder %s54, %s70
      %p72 = scmp.eq.s32.totalorder %s20, 0
      %p73 = por %p71, %p72
      %s75 = sadd.s32 %s74, 1
      %p78 = scmp.eq.s32.totalorder %s14, 1
      %p79 = scmp.ne.s32.totalorder %s74, %s76
      %p80 = scmp.eq.s32.totalorder %s14, 0
      %p81 = por %p79, %p80
      %p82 = scmp.ne.s32.totalorder %s74, %s76
      %p83 = scmp.eq.s32.totalorder %s19, 1
      %p84 = por %p82, %p83
      %p85 = scmp.ne.s32.totalorder %s76, %s77
      %p86 = scmp.eq.s32.totalorder %s19, 0
      %p87 = por %p85, %p86
      %p88 = scmp.ne.s32.totalorder %s76, %s77
      %p89 = scmp.eq.s32.totalorder %s20, 1
      %p90 = por %p88, %p89
      %p92 = scmp.ne.s32.totalorder %s77, %s91
      %p93 = scmp.eq.s32.totalorder %s20, 0
      %p94 = por %p92, %p93
      %s96 = sadd.s32 %s95, 1
      %p99 = scmp.eq.s32.totalorder %s14, 1
      %p100 = scmp.ne.s32.totalorder %s95, %s97
      %p101 = scmp.eq.s32.totalorder %s14, 0
      %p102 = por %p100, %p101
      %p103 = scmp.ne.s32.totalorder %s95, %s97
      %p104 = scmp.eq.s32.totalorder %s19, 1
      %p105 = por %p103, %p104
      %p106 = scmp.ne.s32.totalorder %s97, %s98
      %p107 = scmp.eq.s32.totalorder %s19, 0
      %p108 = por %p106, %p107
      %p109 = scmp.ne.s32.totalorder %s97, %s98
      %p110 = scmp.eq.s32.totalorder %s20, 1
      %p111 = por %p109, %p110
      %p113 = scmp.ne.s32.totalorder %s98, %s112
      %p114 = scmp.eq.s32.totalorder %s20, 0
      %p115 = por %p113, %p114
      %s117 = sadd.s32 %s116, 1
      %p120 = scmp.eq.s32.totalorder %s14, 1
      %p121 = scmp.ne.s32.totalorder %s116, %s118
      %p122 = scmp.eq.s32.totalorder %s14, 0
      %p123 = por %p121, %p122
      %p124 = scmp.ne.s32.totalorder %s116, %s118
      %p125 = scmp.eq.s32.totalorder %s19, 1
      %p126 = por %p124, %p125
      %p127 = scmp.ne.s32.totalorder %s118, %s119
      %p128 = scmp.eq.s32.totalorder %s19, 0
      %p129 = por %p127, %p128
      %p130 = scmp.ne.s32.totalorder %s118, %s119
      %p131 = scmp.eq.s32.totalorder %s20, 1
      %p132 = por %p130, %p131
      %p134 = scmp.ne.s32.totalorder %s119, %s133
      %p135 = scmp.eq.s32.totalorder %s20, 0
      %p136 = por %p134, %p135
      %s138 = sadd.s32 %s137, 1
      %p141 = scmp.eq.s32.totalorder %s14, 1
      %p142 = scmp.ne.s32.totalorder %s137, %s139
      %p143 = scmp.eq.s32.totalorder %s14, 0
      %p144 = por %p142, %p143
      %p145 = scmp.ne.s32.totalorder %s137, %s139
      %p146 = scmp.eq.s32.totalorder %s19, 1
      %p147 = por %p145, %p146
      %p148 = scmp.ne.s32.totalorder %s139, %s140
      %p149 = scmp.eq.s32.totalorder %s19, 0
      %p150 = por %p148, %p149
      %p151 = scmp.ne.s32.totalorder %s139, %s140
      %p152 = scmp.eq.s32.totalorder %s20, 1
      %p153 = por %p151, %p152
      %p155 = scmp.ne.s32.totalorder %s140, %s154
      %p156 = scmp.eq.s32.totalorder %s20, 0
      %p157 = por %p155, %p156
      %s159 = sadd.s32 %s158, 1
      %p162 = scmp.eq.s32.totalorder %s14, 1
      %p163 = scmp.ne.s32.totalorder %s158, %s160
      %p164 = scmp.eq.s32.totalorder %s14, 0
      %p165 = por %p163, %p164
      %p166 = scmp.ne.s32.totalorder %s158, %s160
      %p167 = scmp.eq.s32.totalorder %s19, 1
      %p168 = por %p166, %p167
      %p169 = scmp.ne.s32.totalorder %s160, %s161
      %p170 = scmp.eq.s32.totalorder %s19, 0
      %p171 = por %p169, %p170
      %p172 = scmp.ne.s32.totalorder %s160, %s161
      %p173 = scmp.eq.s32.totalorder %s20, 1
      %p174 = por %p172, %p173
      %p176 = scmp.ne.s32.totalorder %s161, %s175
      %p177 = scmp.eq.s32.totalorder %s20, 0
      %p178 = por %p176, %p177
      %s180 = sadd.s32 %s179, 1
      %p183 = scmp.eq.s32.totalorder %s14, 1
      %p184 = scmp.ne.s32.totalorder %s179, %s181
      %p185 = scmp.eq.s32.totalorder %s14, 0
      %p186 = por %p184, %p185
      %p187 = scmp.ne.s32.totalorder %s179, %s181
      %p188 = scmp.eq.s32.totalorder %s19, 1
      %p189 = por %p187, %p188
      %p190 = scmp.ne.s32.totalorder %s181, %s182
      %p191 = scmp.eq.s32.totalorder %s19, 0
      %p192 = por %p190, %p191
      %p193 = scmp.ne.s32.totalorder %s181, %s182
      %p194 = scmp.eq.s32.totalorder %s20, 1
      %p195 = por %p193, %p194
      %p197 = scmp.ne.s32.totalorder %s182, %s196
      %p198 = scmp.eq.s32.totalorder %s20, 0
      %p199 = por %p197, %p198
      %s200 = ssub.s32 %s14, %s21
      %p201 = scmp.eq.s32.totalorder %s200, 0
      %s203 = sadd.s32 %s202, 1
      %s204 = scalar_select %p201, %s202, %s203
      %p207 = pneg %p201
      %p208 = scmp.eq.s32.totalorder %s14, 1
      %p209 = por %p207, %p208
      %p210 = scmp.ne.s32.totalorder %s202, %s205
      %p211 = scmp.eq.s32.totalorder %s14, 0
      %p212 = por %p210, %p211
      %p213 = scmp.ne.s32.totalorder %s202, %s205
      %p214 = scmp.eq.s32.totalorder %s19, 1
      %p215 = por %p213, %p214
      %p216 = scmp.ne.s32.totalorder %s205, %s206
      %p217 = scmp.eq.s32.totalorder %s19, 0
      %p218 = por %p216, %p217
      %p219 = scmp.ne.s32.totalorder %s205, %s206
      %p220 = scmp.eq.s32.totalorder %s20, 1
      %p221 = por %p219, %p220
      %p223 = scmp.ne.s32.totalorder %s206, %s222
      %p224 = scmp.eq.s32.totalorder %s20, 0
      %p225 = por %p223, %p224
      %p226 = scmp.le.s32.totalorder 1, %s14
      %p227 = scmp.lt.s32.totalorder %s14, 3
      %p228 = pnand %p226, %p227
      %p229 = pneg %p228
      // Predicated region
      $region9: #{td_shaper_forward.1} parent=5 // pred_check
        _
      $region10: #{td_shaper_forward.1} parent=5 // pred_check_branch
        %231 = sbr.rel (%p228) target = $region12
      $region11: #{td_shaper_forward.1} parent=5 // pred_region
        %s232 = ssub.s32 %s14, 1
        // Predicated region
        $region13: #{td_shaper_forward.1} parent=11 // pred_check
          %p233 = pneg %p87
        $region14: #{td_shaper_forward.1} parent=11 // pred_check_branch
          %235 = sbr.rel (%p233) target = $region16
        $region15: #{td_shaper_forward.1} parent=11 // pred_region
          _
        $region16: #{td_shaper_forward.1} parent=11 // pred_fallthru
          _
        // Predicated region
        $region17: #{td_shaper_forward.1} parent=11 // pred_check
          %p236 = pneg %p108
        $region18: #{td_shaper_forward.1} parent=11 // pred_check_branch
          %238 = sbr.rel (%p236) target = $region20
        $region19: #{td_shaper_forward.1} parent=11 // pred_region
          _
        $region20: #{td_shaper_forward.1} parent=11 // pred_fallthru
          _
        // Predicated region
        $region21: #{td_shaper_forward.1} parent=11 // pred_check
          %p239 = pneg %p129
        $region22: #{td_shaper_forward.1} parent=11 // pred_check_branch
          %241 = sbr.rel (%p239) target = $region24
        $region23: #{td_shaper_forward.1} parent=11 // pred_region
          _
        $region24: #{td_shaper_forward.1} parent=11 // pred_fallthru
          _
        // Predicated region
        $region25: #{td_shaper_forward.1} parent=11 // pred_check
          %p242 = pneg %p150
        $region26: #{td_shaper_forward.1} parent=11 // pred_check_branch
          %244 = sbr.rel (%p242) target = $region28
        $region27: #{td_shaper_forward.1} parent=11 // pred_region
          _
        $region28: #{td_shaper_forward.1} parent=11 // pred_fallthru
          _
        // Predicated region
        $region29: #{td_shaper_forward.1} parent=11 // pred_check
          %p245 = pneg %p171
        $region30: #{td_shaper_forward.1} parent=11 // pred_check_branch
          %247 = sbr.rel (%p245) target = $region32
        $region31: #{td_shaper_forward.1} parent=11 // pred_region
          _
        $region32: #{td_shaper_forward.1} parent=11 // pred_fallthru
          _
        // Predicated region
        $region33: #{td_shaper_forward.1} parent=11 // pred_check
          %p248 = pneg %p192
        $region34: #{td_shaper_forward.1} parent=11 // pred_check_branch
          %250 = sbr.rel (%p248) target = $region36
        $region35: #{td_shaper_forward.1} parent=11 // pred_region
          _
        $region36: #{td_shaper_forward.1} parent=11 // pred_fallthru
          _
      $region12: #{td_shaper_forward.1} parent=5 // pred_fallthru
        _
      %p251 = scmp.lt.s32.totalorder %s14, 2
      // Predicated region
      $region37: #{td_shaper_forward.1} parent=5 // pred_check
        %p252 = pneg %p251
      $region38: #{td_shaper_forward.1} parent=5 // pred_check_branch
        %254 = sbr.rel (%p252) target = $region40
      $region39: #{td_shaper_forward.1} parent=5 // pred_region
        // Predicated region
        $region41: #{td_shaper_forward.1} parent=39 // pred_check
          %p255 = pneg %p34
        $region42: #{td_shaper_forward.1} parent=39 // pred_check_branch
          %257 = sbr.rel (%p255) target = $region44
        $region43: #{td_shaper_forward.1} parent=39 // pred_region
          %s258 = sand.u32 %s24, 1
          %s259 = sand.u32 %s24, 1
          %s260 = smul.addr %s259, 32
          %s261 = scalar_lea.vmem [#allocation2], %s260
          %s262 = smul.u32 2, %s14
          %s263 = smul.addr %s262, 8
          %s264 = scalar_lea.vmem %s0, %s263
          // Predicated region
          $region45: #{td_shaper_forward.1} parent=43 // pred_check
            _
          $region46: #{td_shaper_forward.1} parent=43 // pred_check_branch
            %266 = sbr.rel (0) target = $region48
          $region47: #{td_shaper_forward.1} parent=43 // pred_region
            // Predicated region
            $region49: #{td_shaper_forward.1} parent=47 // pred_check
              _
            $region50: #{td_shaper_forward.1} parent=47 // pred_check_branch
              %268 = sbr.rel (0) target = $region52
            $region51: #{td_shaper_forward.1} parent=47 // pred_region
              loop: start=0, step=1, limit=1
              $region53: #{td_shaper_forward.1} parent=51 // loop_pre_header
                _
              $region54: #{td_shaper_forward.1} parent=51 // loop_header
                %s270 = sphi 0, %s274
                %p271 = scmp.ge.s32.totalorder %s270, 1
                %s275 = sphi %s264, %s264
                %s276 = sphi %s261, %s261
              $region55: #{td_shaper_forward.1} parent=51 // loop_header_branch
                %273 = sbr.rel (%p271) target = $region59
              $region56: #{td_shaper_forward.1} parent=51 // loop_body
                %v277 = vld [vmem:[%s275] sm:$0xff]
                %278 = vst [vmem:[%s276] sm:$0xff] %v277
                %v279 = vld [vmem:[%s275 + $0x8] sm:$0xff]
                %280 = vst [vmem:[%s276 + $0x8] sm:$0xff] %v279
                %v281 = vld [vmem:[%s275 + $0x20] sm:$0xff]
                %282 = vst [vmem:[%s276 + $0x10] sm:$0xff] %v281
                %v283 = vld [vmem:[%s275 + $0x28] sm:$0xff]
                %284 = vst [vmem:[%s276 + $0x18] sm:$0xff] %v283
              $region57: #{td_shaper_forward.1} parent=51 // loop_footer
                %s274 = sadd.s32 1, %s270
              $region58: #{td_shaper_forward.1} parent=51 // loop_footer_branch
                %269 = sbr.rel target = $region54
              $region59: #{td_shaper_forward.1} parent=51 // loop_exit
                _
            $region52: #{td_shaper_forward.1} parent=47 // pred_fallthru
              _
            // Predicated region
            $region60: #{td_shaper_forward.1} parent=47 // pred_check
              _
            $region61: #{td_shaper_forward.1} parent=47 // pred_check_branch
              %286 = sbr.rel target = $region63
            $region62: #{td_shaper_forward.1} parent=47 // pred_region
              _
            $region63: #{td_shaper_forward.1} parent=47 // pred_fallthru
              _
          $region48: #{td_shaper_forward.1} parent=43 // pred_fallthru
            _
          %287 = vnop
        $region44: #{td_shaper_forward.1} parent=39 // pred_fallthru
          _
        // Predicated region
        $region64: #{td_shaper_forward.1} parent=39 // pred_check
          %p288 = pneg %p60
        $region65: #{td_shaper_forward.1} parent=39 // pred_check_branch
          %290 = sbr.rel (%p288) target = $region67
        $region66: #{td_shaper_forward.1} parent=39 // pred_region
          %s291 = sand.u32 %s50, 1
          %s292 = sand.u32 %s50, 1
          %s293 = smul.addr %s292, 64
          %s294 = scalar_lea.vmem [#allocation3], %s293
          %s295 = smul.u32 2, %s14
          %s296 = smul.addr %s295, 8
          %s297 = scalar_lea.vmem %s1, %s296
          // Predicated region
          $region68: #{td_shaper_forward.1} parent=66 // pred_check
            _
          $region69: #{td_shaper_forward.1} parent=66 // pred_check_branch
            %299 = sbr.rel (0) target = $region71
          $region70: #{td_shaper_forward.1} parent=66 // pred_region
            // Predicated region
            $region72: #{td_shaper_forward.1} parent=70 // pred_check
              _
            $region73: #{td_shaper_forward.1} parent=70 // pred_check_branch
              %301 = sbr.rel (0) target = $region75
            $region74: #{td_shaper_forward.1} parent=70 // pred_region
              loop: start=0, step=1, limit=1
              $region76: #{td_shaper_forward.1} parent=74 // loop_pre_header
                _
              $region77: #{td_shaper_forward.1} parent=74 // loop_header
                %s303 = sphi 0, %s307
                %p304 = scmp.ge.s32.totalorder %s303, 1
                %s308 = sphi %s297, %s297
                %s309 = sphi %s294, %s294
              $region78: #{td_shaper_forward.1} parent=74 // loop_header_branch
                %306 = sbr.rel (%p304) target = $region82
              $region79: #{td_shaper_forward.1} parent=74 // loop_body
                %v310 = vld [vmem:[%s308] sm:$0xff]
                %311 = vst [vmem:[%s309] sm:$0xff] %v310
                %v312 = vld [vmem:[%s308 + $0x8] sm:$0xff]
                %313 = vst [vmem:[%s309 + $0x8] sm:$0xff] %v312
                %v314 = vld [vmem:[%s308 + $0x20] sm:$0xff]
                %315 = vst [vmem:[%s309 + $0x10] sm:$0xff] %v314
                %v316 = vld [vmem:[%s308 + $0x28] sm:$0xff]
                %317 = vst [vmem:[%s309 + $0x18] sm:$0xff] %v316
                %v318 = vld [vmem:[%s308 + $0x40] sm:$0xff]
                %319 = vst [vmem:[%s309 + $0x20] sm:$0xff] %v318
                %v320 = vld [vmem:[%s308 + $0x48] sm:$0xff]
                %321 = vst [vmem:[%s309 + $0x28] sm:$0xff] %v320
                %v322 = vld [vmem:[%s308 + $0x60] sm:$0xff]
                %323 = vst [vmem:[%s309 + $0x30] sm:$0xff] %v322
                %v324 = vld [vmem:[%s308 + $0x68] sm:$0xff]
                %325 = vst [vmem:[%s309 + $0x38] sm:$0xff] %v324
              $region80: #{td_shaper_forward.1} parent=74 // loop_footer
                %s307 = sadd.s32 1, %s303
              $region81: #{td_shaper_forward.1} parent=74 // loop_footer_branch
                %302 = sbr.rel target = $region77
              $region82: #{td_shaper_forward.1} parent=74 // loop_exit
                _
            $region75: #{td_shaper_forward.1} parent=70 // pred_fallthru
              _
            // Predicated region
            $region83: #{td_shaper_forward.1} parent=70 // pred_check
              _
            $region84: #{td_shaper_forward.1} parent=70 // pred_check_branch
              %327 = sbr.rel target = $region86
            $region85: #{td_shaper_forward.1} parent=70 // pred_region
              _
            $region86: #{td_shaper_forward.1} parent=70 // pred_fallthru
              _
          $region71: #{td_shaper_forward.1} parent=66 // pred_fallthru
            _
          %328 = vnop
        $region67: #{td_shaper_forward.1} parent=39 // pred_fallthru
          _
      $region40: #{td_shaper_forward.1} parent=5 // pred_fallthru
        _
      %p329 = scmp.le.s32.totalorder 1, %s14
      %p330 = scmp.lt.s32.totalorder %s14, 3
      %p331 = pnand %p329, %p330
      %p332 = pneg %p331
      // Predicated region
      $region87: #{td_shaper_forward.1} parent=5 // pred_check
        _
      $region88: #{td_shaper_forward.1} parent=5 // pred_check_branch
        %334 = sbr.rel (%p331) target = $region90
      $region89: #{td_shaper_forward.1} parent=5 // pred_region
        %s335 = ssub.s32 %s14, 1
        %s336 = sand.u32 %s27, 1
        %s337 = sand.u32 %s27, 1
        %s338 = smul.addr %s337, 32
        %s339 = scalar_lea.vmem [#allocation2], %s338
        // Predicated region
        $region91: #{td_shaper_forward.1} parent=89 // pred_check
          %p340 = pneg %p40
        $region92: #{td_shaper_forward.1} parent=89 // pred_check_branch
          %342 = sbr.rel (%p340) target = $region94
        $region93: #{td_shaper_forward.1} parent=89 // pred_region
          _
        $region94: #{td_shaper_forward.1} parent=89 // pred_fallthru
          _
        %s343 = sand.u32 %s53, 1
        %s344 = sand.u32 %s53, 1
        %s345 = smul.addr %s344, 64
        %s346 = scalar_lea.vmem [#allocation3], %s345
        // Predicated region
        $region95: #{td_shaper_forward.1} parent=89 // pred_check
          %p347 = pneg %p66
        $region96: #{td_shaper_forward.1} parent=89 // pred_check_branch
          %349 = sbr.rel (%p347) target = $region98
        $region97: #{td_shaper_forward.1} parent=89 // pred_region
          _
        $region98: #{td_shaper_forward.1} parent=89 // pred_fallthru
          _
        %s350 = sand.u32 %s27, 1
        %s351 = sand.u32 %s27, 1
        %s352 = smul.addr %s351, 32
        %s353 = scalar_lea.vmem [#allocation2], %s352
        %p354 = pneg %p40
        %p355 = pneg %p37
        %s356 = sand.u32 %s53, 1
        %s357 = sand.u32 %s53, 1
        %s358 = smul.addr %s357, 64
        %s359 = scalar_lea.vmem [#allocation3], %s358
        %p360 = pneg %p66
        %p361 = pneg %p63
        %p362 = pneg %p87
        %p363 = pneg %p84
        %p364 = pneg %p108
        %p365 = pneg %p105
        %p366 = pneg %p129
        %p367 = pneg %p126
        %p368 = pneg %p150
        %p369 = pneg %p147
        %p370 = pneg %p171
        %p371 = pneg %p168
        %p372 = pneg %p192
        %p373 = pneg %p189
        %p374 = pneg %p218
        %p375 = pneg %p215
        %s376 = sand.u32 %s205, 1
        %s377 = sand.u32 %s205, 1
        %s378 = smul.addr %s377, 32
        %s379 = scalar_lea.vmem [#allocation4], %s378
        %s380 = smul.u32 2, %s19
        %s381 = smul.u32 2, %s19
        %s382 = smul.u32 2, %s19
        %v383 = vld [vmem:[%s339] sm:$0xff]
        %v384 = vld [vmem:[%s339 + $0x8] sm:$0xff]
        %v385 = vld [vmem:[%s339 + $0x10] sm:$0xff]
        %v386 = vld [vmem:[%s339 + $0x18] sm:$0xff]
        %v387 = vld [vmem:[%s346] sm:$0xff]
        %v388 = vld [vmem:[%s346 + $0x8] sm:$0xff]
        %v389 = vld [vmem:[%s346 + $0x10] sm:$0xff]
        %v390 = vld [vmem:[%s346 + $0x18] sm:$0xff]
        %v391 = vld [vmem:[%s346 + $0x20] sm:$0xff]
        %v392 = vld [vmem:[%s346 + $0x28] sm:$0xff]
        %v393 = vld [vmem:[%s346 + $0x30] sm:$0xff]
        %v394 = vld [vmem:[%s346 + $0x38] sm:$0xff]
        %v395 = vand.u32 2147483647, %v383
        %v396 = vand.u32 2147483647, %v384
        %v397 = vand.u32 2147483647, %v385
        %v398 = vand.u32 2147483647, %v386
        %v399 = vld [vmem:[%s5] sm:$0xf]
        %vm400 = vcmask 130048
        %v402 = vsel %vm400, %v399, 0
        %404 = vmatprep.subr.mxu0 %v396
        %405 = vmatpush1.msra.mxu0 %v395
        %406 = vmatprep.subr.mxu0 %v398
        %407 = vmatpush1.msra.mxu0 %v397
        %408 = vmatprep.subr.mxu0 0.0
        %409 = vmatpush1.msra.mxu0 0.0
        %410 = vmatprep.subr.mxu0 0.0
        %411 = vmatpush1.msra.mxu0 0.0
        %412 = vmatprep.subr.mxu0 0.0
        %413 = vmatpush1.msra.mxu0 0.0
        %414 = vmatprep.subr.mxu0 0.0
        %415 = vmatpush1.msra.mxu0 0.0
        %416 = vmatprep.subr.mxu0 0.0
        %417 = vmatpush1.msra.mxu0 0.0
        %418 = vmatprep.subr.mxu0 0.0
        %419 = vmatpush1.msra.mxu0 0.0
        %420 = vmatprep.subr.mxu0 0.0
        %421 = vmatpush1.msra.mxu0 0.0
        %422 = vmatprep.subr.mxu0 0.0
        %423 = vmatpush1.msra.mxu0 0.0
        %424 = vmatprep.subr.mxu0 0.0
        %425 = vmatpush1.msra.mxu0 0.0
        %426 = vmatprep.subr.mxu0 0.0
        %427 = vmatpush1.msra.mxu0 0.0
        %428 = vmatprep.subr.mxu0 0.0
        %429 = vmatpush1.msra.mxu0 0.0
        %430 = vmatprep.subr.mxu0 0.0
        %431 = vmatpush1.msra.mxu0 0.0
        %432 = vmatprep.subr.mxu0 0.0
        %433 = vmatpush1.msra.mxu0 0.0
        %434 = vmatprep.subr.mxu0 0.0
        %435 = vmatpush1.msra.mxu0 0.0
        %436 = vmatprep.subr.mxu0 0.0
        %437 = vmatpush1.msra.mxu0 0.0
        %438 = vmatprep.subr.mxu0 0.0
        %439 = vmatpush1.msra.mxu0 0.0
        %440 = vmatprep.subr.mxu0 0.0
        %441 = vmatpush1.msra.mxu0 0.0
        %442 = vmatprep.subr.mxu0 0.0
        %443 = vmatpush1.msra.mxu0 0.0
        %444 = vmatprep.subr.mxu0 0.0
        %445 = vmatpush1.msra.mxu0 0.0
        %446 = vmatprep.subr.mxu0 0.0
        %447 = vmatpush1.msra.mxu0 0.0
        %448 = vmatprep.subr.mxu0 0.0
        %449 = vmatpush1.msra.mxu0 0.0
        %450 = vmatprep.subr.mxu0 0.0
        %451 = vmatpush1.msra.mxu0 0.0
        %452 = vmatprep.subr.mxu0 0.0
        %453 = vmatpush1.msra.mxu0 0.0
        %454 = vmatprep.subr.mxu0 0.0
        %455 = vmatpush1.msra.mxu0 0.0
        %456 = vmatprep.subr.mxu0 0.0
        %457 = vmatpush1.msra.mxu0 0.0
        %458 = vmatprep.subr.mxu0 0.0
        %459 = vmatpush1.msra.mxu0 0.0
        %460 = vmatprep.subr.mxu0 0.0
        %461 = vmatpush1.msra.mxu0 0.0
        %462 = vmatprep.subr.mxu0 0.0
        %463 = vmatpush1.msra.mxu0 0.0
        %464 = vmatprep.subr.mxu0 0.0
        %465 = vmatpush1.msra.mxu0 0.0
        %466 = vmatprep.subr.mxu0 0.0
        %467 = vmatpush1.msra.mxu0 0.0
        %468 = vmatprep.mubr.f32.mxu0 0.0
        %469 = vmatmul.mubr.f32.gmra.mrb[0].mxu0 %v402
        %v470 = vpop.f32.mrb[0].mxu0
        %v471 = vadd.f32 1.5258789e-05, %v470
        %v472 = vpop.f32.mrb[0].mxu0
        %v473 = vadd.f32 1.5258789e-05, %v472
        %474 = vdwg.mxu0
        %v475 = vlog2.pop %v471
        %v476 = vmul.f32 %v475, 0.6931472
        %v477 = vlog2.pop %v473
        %v478 = vmul.f32 %v477, 0.6931472
        %v479 = vlaneseq
        %v480 = vand.u32 %v479, 127
        %v481 = vadd.s32 %v480, 128
        %vm482 = vcmp.eq.s32.totalorder %v480, 0
        %vm483 = vcmp.eq.s32.totalorder %v481, 0
        %vm484 = vcmp.eq.s32.totalorder %v480, 128
        %vm485 = vcmp.eq.s32.totalorder %v481, 128
        %vm486 = vmor %vm482, %vm484
        %vm487 = vmor %vm483, %vm485
        %v488 = vld [vmem:[%s2] sm:$0xff]
        %v489 = vld [vmem:[%s2 + $0x8] sm:$0xff]
        %v490 = vld [vmem:[%s2 + $0x10] sm:$0xff]
        %v491 = vld [vmem:[%s2 + $0x18] sm:$0xff]
        %v492 = vld [vmem:[%s3] sm:$0xff]
        %v493 = vld [vmem:[%s3 + $0x8] sm:$0xff]
        %v494 = vld [vmem:[%s3 + $0x10] sm:$0xff]
        %v495 = vld [vmem:[%s3 + $0x18] sm:$0xff]
        %vm496 = vcmask 31744
        %v498 = vsel %vm496, %v492, 0
        %v501 = vsel %vm496, %v493, 0
        %v504 = vsel %vm496, %v494, 0
        %v507 = vsel %vm496, %v495, 0
        %vm509 = vcmask 1043456
        %v511 = vsel %vm509, %v476, 0
        %v514 = vsel %vm509, %v478, 0
        %516 = vmatprep.subr.mxu0 %v514
        %517 = vmatpush1.msra.mxu0 %v511
        %518 = vmatprep.subr.mxu0 0.0
        %519 = vmatpush1.msra.mxu0 0.0
        %520 = vmatprep.subr.mxu0 0.0
        %521 = vmatpush1.msra.mxu0 0.0
        %522 = vmatprep.subr.mxu0 0.0
        %523 = vmatpush1.msra.mxu0 0.0
        %524 = vmatprep.subr.mxu0 0.0
        %525 = vmatpush1.msra.mxu0 0.0
        %526 = vmatprep.subr.mxu0 0.0
        %527 = vmatpush1.msra.mxu0 0.0
        %528 = vmatprep.subr.mxu0 0.0
        %529 = vmatpush1.msra.mxu0 0.0
        %530 = vmatprep.subr.mxu0 0.0
        %531 = vmatpush1.msra.mxu0 0.0
        %532 = vmatprep.subr.mxu0 0.0
        %533 = vmatpush1.msra.mxu0 0.0
        %534 = vmatprep.subr.mxu0 0.0
        %535 = vmatpush1.msra.mxu0 0.0
        %536 = vmatprep.subr.mxu0 0.0
        %537 = vmatpush1.msra.mxu0 0.0
        %538 = vmatprep.subr.mxu0 0.0
        %539 = vmatpush1.msra.mxu0 0.0
        %540 = vmatprep.subr.mxu0 0.0
        %541 = vmatpush1.msra.mxu0 0.0
        %542 = vmatprep.subr.mxu0 0.0
        %543 = vmatpush1.msra.mxu0 0.0
        %544 = vmatprep.subr.mxu0 0.0
        %545 = vmatpush1.msra.mxu0 0.0
        %546 = vmatprep.subr.mxu0 0.0
        %547 = vmatpush1.msra.mxu0 0.0
        %548 = vmatprep.subr.mxu0 0.0
        %549 = vmatpush1.msra.mxu0 0.0
        %550 = vmatprep.subr.mxu0 0.0
        %551 = vmatpush1.msra.mxu0 0.0
        %552 = vmatprep.subr.mxu0 0.0
        %553 = vmatpush1.msra.mxu0 0.0
        %554 = vmatprep.subr.mxu0 0.0
        %555 = vmatpush1.msra.mxu0 0.0
        %556 = vmatprep.subr.mxu0 0.0
        %557 = vmatpush1.msra.mxu0 0.0
        %558 = vmatprep.subr.mxu0 0.0
        %559 = vmatpush1.msra.mxu0 0.0
        %560 = vmatprep.subr.mxu0 0.0
        %561 = vmatpush1.msra.mxu0 0.0
        %562 = vmatprep.subr.mxu0 0.0
        %563 = vmatpush1.msra.mxu0 0.0
        %564 = vmatprep.subr.mxu0 0.0
        %565 = vmatpush1.msra.mxu0 0.0
        %566 = vmatprep.subr.mxu0 0.0
        %567 = vmatpush1.msra.mxu0 0.0
        %568 = vmatprep.subr.mxu0 0.0
        %569 = vmatpush1.msra.mxu0 0.0
        %570 = vmatprep.subr.mxu0 0.0
        %571 = vmatpush1.msra.mxu0 0.0
        %572 = vmatprep.subr.mxu0 0.0
        %573 = vmatpush1.msra.mxu0 0.0
        %574 = vmatprep.subr.mxu0 0.0
        %575 = vmatpush1.msra.mxu0 0.0
        %576 = vmatprep.subr.mxu0 0.0
        %577 = vmatpush1.msra.mxu0 0.0
        %578 = vmatprep.subr.mxu0 0.0
        %579 = vmatpush1.msra.mxu0 0.0
        %580 = vmatprep.mubr.f32.mxu0 0.0
        %581 = vmatmul.mubr.f32.gmra.mrb[0].mxu0 %v498
        %v582 = vpop.f32.mrb[0].mxu0
        %v583 = vadd.f32 0.0, %v582
        %v584 = vpop.f32.mrb[0].mxu0
        %v585 = vadd.f32 0.0, %v584
        %586 = vmatprep.mubr.f32.mxu0 0.0
        %587 = vmatmul.mubr.f32.gmra.mrb[0].mxu0 %v501
        %v588 = vpop.f32.mrb[0].mxu0
        %v589 = vadd.f32 0.0, %v588
        %v590 = vpop.f32.mrb[0].mxu0
        %v591 = vadd.f32 0.0, %v590
        %592 = vmatprep.mubr.f32.mxu0 0.0
        %593 = vmatmul.mubr.f32.gmra.mrb[0].mxu0 %v504
        %v594 = vpop.f32.mrb[0].mxu0
        %v595 = vadd.f32 0.0, %v594
        %v596 = vpop.f32.mrb[0].mxu0
        %v597 = vadd.f32 0.0, %v596
        %598 = vmatprep.mubr.f32.mxu0 0.0
        %599 = vmatmul.mubr.f32.gmra.mrb[0].mxu0 %v507
        %v600 = vpop.f32.mrb[0].mxu0
        %v601 = vadd.f32 0.0, %v600
        %v602 = vpop.f32.mrb[0].mxu0
        %v603 = vadd.f32 0.0, %v602
        %604 = vdwg.mxu0
        %vm605 = vcmask 261120
        %v607 = vsel %vm605, %v488, 0
        %v610 = vsel %vm605, %v489, 0
        %v613 = vsel %vm605, %v490, 0
        %v616 = vsel %vm605, %v491, 0
        %618 = vmatprep.subr.mxu0 %v388
        %619 = vmatpush1.msra.mxu0 %v387
        %620 = vmatprep.subr.mxu0 %v390
        %621 = vmatpush1.msra.mxu0 %v389
        %622 = vmatprep.subr.mxu0 %v392
        %623 = vmatpush1.msra.mxu0 %v391
        %624 = vmatprep.subr.mxu0 %v394
        %625 = vmatpush1.msra.mxu0 %v393
        %626 = vmatprep.subr.mxu0 0.0
        %627 = vmatpush1.msra.mxu0 0.0
        %628 = vmatprep.subr.mxu0 0.0
        %629 = vmatpush1.msra.mxu0 0.0
        %630 = vmatprep.subr.mxu0 0.0
        %631 = vmatpush1.msra.mxu0 0.0
        %632 = vmatprep.subr.mxu0 0.0
        %633 = vmatpush1.msra.mxu0 0.0
        %634 = vmatprep.subr.mxu0 0.0
        %635 = vmatpush1.msra.mxu0 0.0
        %636 = vmatprep.subr.mxu0 0.0
        %637 = vmatpush1.msra.mxu0 0.0
        %638 = vmatprep.subr.mxu0 0.0
        %639 = vmatpush1.msra.mxu0 0.0
        %640 = vmatprep.subr.mxu0 0.0
        %641 = vmatpush1.msra.mxu0 0.0
        %642 = vmatprep.subr.mxu0 0.0
        %643 = vmatpush1.msra.mxu0 0.0
        %644 = vmatprep.subr.mxu0 0.0
        %645 = vmatpush1.msra.mxu0 0.0
        %646 = vmatprep.subr.mxu0 0.0
        %647 = vmatpush1.msra.mxu0 0.0
        %648 = vmatprep.subr.mxu0 0.0
        %649 = vmatpush1.msra.mxu0 0.0
        %650 = vmatprep.subr.mxu0 0.0
        %651 = vmatpush1.msra.mxu0 0.0
        %652 = vmatprep.subr.mxu0 0.0
        %653 = vmatpush1.msra.mxu0 0.0
        %654 = vmatprep.subr.mxu0 0.0
        %655 = vmatpush1.msra.mxu0 0.0
        %656 = vmatprep.subr.mxu0 0.0
        %657 = vmatpush1.msra.mxu0 0.0
        %658 = vmatprep.subr.mxu0 0.0
        %659 = vmatpush1.msra.mxu0 0.0
        %660 = vmatprep.subr.mxu0 0.0
        %661 = vmatpush1.msra.mxu0 0.0
        %662 = vmatprep.subr.mxu0 0.0
        %663 = vmatpush1.msra.mxu0 0.0
        %664 = vmatprep.subr.mxu0 0.0
        %665 = vmatpush1.msra.mxu0 0.0
        %666 = vmatprep.subr.mxu0 0.0
        %667 = vmatpush1.msra.mxu0 0.0
        %668 = vmatprep.subr.mxu0 0.0
        %669 = vmatpush1.msra.mxu0 0.0
        %670 = vmatprep.subr.mxu0 0.0
        %671 = vmatpush1.msra.mxu0 0.0
        %672 = vmatprep.subr.mxu0 0.0
        %673 = vmatpush1.msra.mxu0 0.0
        %674 = vmatprep.subr.mxu0 0.0
        %675 = vmatpush1.msra.mxu0 0.0
        %676 = vmatprep.subr.mxu0 0.0
        %677 = vmatpush1.msra.mxu0 0.0
        %678 = vmatprep.subr.mxu0 0.0
        %679 = vmatpush1.msra.mxu0 0.0
        %680 = vmatprep.subr.mxu0 0.0
        %681 = vmatpush1.msra.mxu0 0.0
        %682 = vmatprep.mubr.f32.mxu0 0.0
        %683 = vmatmul.mubr.f32.gmra.mrb[0].mxu0 %v607
        %v684 = vpop.f32.mrb[0].mxu0
        %v685 = vadd.f32 %v583, %v684
        %v686 = vpop.f32.mrb[0].mxu0
        %v687 = vadd.f32 %v585, %v686
        %688 = vmatprep.mubr.f32.mxu0 0.0
        %689 = vmatmul.mubr.f32.gmra.mrb[0].mxu0 %v610
        %v690 = vpop.f32.mrb[0].mxu0
        %v691 = vadd.f32 %v589, %v690
        %v692 = vpop.f32.mrb[0].mxu0
        %v693 = vadd.f32 %v591, %v692
        %694 = vmatprep.mubr.f32.mxu0 0.0
        %695 = vmatmul.mubr.f32.gmra.mrb[0].mxu0 %v613
        %v696 = vpop.f32.mrb[0].mxu0
        %v697 = vadd.f32 %v595, %v696
        %v698 = vpop.f32.mrb[0].mxu0
        %v699 = vadd.f32 %v597, %v698
        %700 = vmatprep.mubr.f32.mxu0 0.0
        %701 = vmatmul.mubr.f32.gmra.mrb[0].mxu0 %v616
        %v702 = vpop.f32.mrb[0].mxu0
        %v703 = vadd.f32 %v601, %v702
        %v704 = vpop.f32.mrb[0].mxu0
        %v705 = vadd.f32 %v603, %v704
        %706 = vdwg.mxu0
        %707 = vrot.lane.b32.xlu0 %v697, 1
        %v708 = vpop.permute.xlu0 %707
        %709 = vrot.lane.b32.xlu0 %v703, 1
        %v710 = vpop.permute.xlu0 %709
        %711 = vrot.lane.b32.xlu0 %v699, 1
        %v712 = vpop.permute.xlu0 %711
        %713 = vrot.lane.b32.xlu0 %v705, 1
        %v714 = vpop.permute.xlu0 %713
        %vm715 = vcmp.lt.s32.totalorder %v480, 1
        %v716 = vsel %vm715, %v708, %v712
        %v717 = vsel %vm715, %v710, %v714
        %v718 = vsel %vm715, %v712, %v708
        %v719 = vsel %vm715, %v714, %v710
        %v720 = vsel %vm486, 1, 0
        %v721 = vsel %vm487, 1, 0
        %vm722 = vcmp.eq.s32.totalorder %v720, 1
        %vm723 = vcmp.eq.s32.totalorder %v721, 1
        %v724 = vsel %vm722, 0.0, %v718
        %v725 = vsel %vm723, 0.0, %v716
        %v726 = vsel %vm722, 0.0, %v719
        %v727 = vsel %vm723, 0.0, %v717
        %v728 = vadd.f32 %v685, %v724
        %v729 = vadd.f32 %v687, %v725
        %v730 = vadd.f32 %v691, %v726
        %v731 = vadd.f32 %v693, %v727
        %v732 = vld [vmem:[%s6] sm:$0xff]
        %v733 = vld [vmem:[%s6 + $0x8] sm:$0xff]
        %735 = vset.pattern.permute.xlu0 0
        %736 = vperm.xlu0 %735, %v732
        %v737 = vpop.permute.xlu0 %736
        %740 = vset.pattern.permute.xlu0 0
        %741 = vperm.xlu0 %740, %v733
        %v742 = vpop.permute.xlu0 %741
        %v744 = vadd.f32 %v728, %v737
        %v745 = vadd.f32 %v729, %v737
        %v746 = vadd.f32 %v730, %v742
        %v747 = vadd.f32 %v731, %v742
        %vm748 = vcmp.ge.f32.partialorder %v744, 0.0
        %vm749 = vcmp.ge.f32.partialorder %v745, 0.0
        %vm750 = vcmp.ge.f32.partialorder %v746, 0.0
        %vm751 = vcmp.ge.f32.partialorder %v747, 0.0
        %v752 = vmul.f32 %v744, 0.2
        %v753 = vmul.f32 %v745, 0.2
        %v754 = vmul.f32 %v746, 0.2
        %v755 = vmul.f32 %v747, 0.2
        %v756 = vsel %vm748, %v744, %v752
        %v757 = vsel %vm749, %v745, %v753
        %v758 = vsel %vm750, %v746, %v754
        %v759 = vsel %vm751, %v747, %v755
        %v760 = vld [vmem:[%s4] sm:$0xff]
        %v761 = vld [vmem:[%s4 + $0x8] sm:$0xff]
        %v762 = vld [vmem:[%s4 + $0x10] sm:$0xff]
        %v763 = vld [vmem:[%s4 + $0x18] sm:$0xff]
        %v765 = vsel %vm400, %v760, 0
        %v768 = vsel %vm400, %v761, 0
        %v771 = vsel %vm400, %v762, 0
        %v774 = vsel %vm400, %v763, 0
        %776 = vmatprep.subr.mxu0 %v757
        %777 = vmatpush1.msra.mxu0 %v756
        %778 = vmatprep.subr.mxu0 %v759
        %779 = vmatpush1.msra.mxu0 %v758
        %780 = vmatprep.subr.mxu0 0.0
        %781 = vmatpush1.msra.mxu0 0.0
        %782 = vmatprep.subr.mxu0 0.0
        %783 = vmatpush1.msra.mxu0 0.0
        %784 = vmatprep.subr.mxu0 0.0
        %785 = vmatpush1.msra.mxu0 0.0
        %786 = vmatprep.subr.mxu0 0.0
        %787 = vmatpush1.msra.mxu0 0.0
        %788 = vmatprep.subr.mxu0 0.0
        %789 = vmatpush1.msra.mxu0 0.0
        %790 = vmatprep.subr.mxu0 0.0
        %791 = vmatpush1.msra.mxu0 0.0
        %792 = vmatprep.subr.mxu0 0.0
        %793 = vmatpush1.msra.mxu0 0.0
        %794 = vmatprep.subr.mxu0 0.0
        %795 = vmatpush1.msra.mxu0 0.0
        %796 = vmatprep.subr.mxu0 0.0
        %797 = vmatpush1.msra.mxu0 0.0
        %798 = vmatprep.subr.mxu0 0.0
        %799 = vmatpush1.msra.mxu0 0.0
        %800 = vmatprep.subr.mxu0 0.0
        %801 = vmatpush1.msra.mxu0 0.0
        %802 = vmatprep.subr.mxu0 0.0
        %803 = vmatpush1.msra.mxu0 0.0
        %804 = vmatprep.subr.mxu0 0.0
        %805 = vmatpush1.msra.mxu0 0.0
        %806 = vmatprep.subr.mxu0 0.0
        %807 = vmatpush1.msra.mxu0 0.0
        %808 = vmatprep.subr.mxu0 0.0
        %809 = vmatpush1.msra.mxu0 0.0
        %810 = vmatprep.subr.mxu0 0.0
        %811 = vmatpush1.msra.mxu0 0.0
        %812 = vmatprep.subr.mxu0 0.0
        %813 = vmatpush1.msra.mxu0 0.0
        %814 = vmatprep.subr.mxu0 0.0
        %815 = vmatpush1.msra.mxu0 0.0
        %816 = vmatprep.subr.mxu0 0.0
        %817 = vmatpush1.msra.mxu0 0.0
        %818 = vmatprep.subr.mxu0 0.0
        %819 = vmatpush1.msra.mxu0 0.0
        %820 = vmatprep.subr.mxu0 0.0
        %821 = vmatpush1.msra.mxu0 0.0
        %822 = vmatprep.subr.mxu0 0.0
        %823 = vmatpush1.msra.mxu0 0.0
        %824 = vmatprep.subr.mxu0 0.0
        %825 = vmatpush1.msra.mxu0 0.0
        %826 = vmatprep.subr.mxu0 0.0
        %827 = vmatpush1.msra.mxu0 0.0
        %828 = vmatprep.subr.mxu0 0.0
        %829 = vmatpush1.msra.mxu0 0.0
        %830 = vmatprep.subr.mxu0 0.0
        %831 = vmatpush1.msra.mxu0 0.0
        %832 = vmatprep.subr.mxu0 0.0
        %833 = vmatpush1.msra.mxu0 0.0
        %834 = vmatprep.subr.mxu0 0.0
        %835 = vmatpush1.msra.mxu0 0.0
        %836 = vmatprep.subr.mxu0 0.0
        %837 = vmatpush1.msra.mxu0 0.0
        %838 = vmatprep.subr.mxu0 0.0
        %839 = vmatpush1.msra.mxu0 0.0
        %840 = vmatprep.mubr.f32.mxu0 0.0
        %841 = vmatmul.mubr.f32.gmra.mrb[0].mxu0 %v765
        %v842 = vpop.f32.mrb[0].mxu0
        %v843 = vadd.f32 0.0, %v842
        %v844 = vpop.f32.mrb[0].mxu0
        %v845 = vadd.f32 0.0, %v844
        %846 = vmatprep.mubr.f32.mxu0 0.0
        %847 = vmatmul.mubr.f32.gmra.mrb[0].mxu0 %v768
        %v848 = vpop.f32.mrb[0].mxu0
        %v849 = vadd.f32 0.0, %v848
        %v850 = vpop.f32.mrb[0].mxu0
        %v851 = vadd.f32 0.0, %v850
        %852 = vmatprep.mubr.f32.mxu0 0.0
        %853 = vmatmul.mubr.f32.gmra.mrb[0].mxu0 %v771
        %v854 = vpop.f32.mrb[0].mxu0
        %v855 = vadd.f32 0.0, %v854
        %v856 = vpop.f32.mrb[0].mxu0
        %v857 = vadd.f32 0.0, %v856
        %858 = vmatprep.mubr.f32.mxu0 0.0
        %859 = vmatmul.mubr.f32.gmra.mrb[0].mxu0 %v774
        %v860 = vpop.f32.mrb[0].mxu0
        %v861 = vadd.f32 0.0, %v860
        %v862 = vpop.f32.mrb[0].mxu0
        %v863 = vadd.f32 0.0, %v862
        %864 = vdwg.mxu0
        %865 = vrot.lane.b32.xlu0 %v855, 1
        %v866 = vpop.permute.xlu0 %865
        %867 = vrot.lane.b32.xlu0 %v861, 1
        %v868 = vpop.permute.xlu0 %867
        %869 = vrot.lane.b32.xlu0 %v857, 1
        %v870 = vpop.permute.xlu0 %869
        %871 = vrot.lane.b32.xlu0 %v863, 1
        %v872 = vpop.permute.xlu0 %871
        %v873 = vsel %vm715, %v866, %v870
        %v874 = vsel %vm715, %v868, %v872
        %v875 = vsel %vm715, %v870, %v866
        %v876 = vsel %vm715, %v872, %v868
        %v877 = vsel %vm722, 0.0, %v875
        %v878 = vsel %vm723, 0.0, %v873
        %v879 = vsel %vm722, 0.0, %v876
        %v880 = vsel %vm723, 0.0, %v874
        %v881 = vadd.f32 %v843, %v877
        %v882 = vadd.f32 %v845, %v878
        %v883 = vadd.f32 %v849, %v879
        %v884 = vadd.f32 %v851, %v880
        %v885 = vld [vmem:[%s7] sm:$0xff]
        %v886 = vld [vmem:[%s7 + $0x8] sm:$0xff]
        %888 = vset.pattern.permute.xlu0 0
        %889 = vperm.xlu0 %888, %v885
        %v890 = vpop.permute.xlu0 %889
        %893 = vset.pattern.permute.xlu0 0
        %894 = vperm.xlu0 %893, %v886
        %v895 = vpop.permute.xlu0 %894
        %v897 = vadd.f32 %v881, %v890
        %v898 = vadd.f32 %v882, %v890
        %v899 = vadd.f32 %v883, %v895
        %v900 = vadd.f32 %v884, %v895
        %v901 = vmul.f32 %v897, 1.442695
        %v902 = vpow.pop %v901
        %v903 = vmul.f32 %v898, 1.442695
        %v904 = vpow.pop %v903
        %v905 = vmul.f32 %v899, 1.442695
        %v906 = vpow.pop %v905
        %v907 = vmul.f32 %v900, 1.442695
        %v908 = vpow.pop %v907
        %v909 = vmul.f32 %v902, %v383
        %v910 = vmul.f32 %v904, %v384
        %v911 = vmul.f32 %v906, %v385
        %v912 = vmul.f32 %v908, %v386
        %913 = vst [vmem:[%s379] sm:$0xff] %v909
        %914 = vst [vmem:[%s379 + $0x8] sm:$0xff] %v910
        %915 = vst [vmem:[%s379 + $0x10] sm:$0xff] %v911
        %916 = vst [vmem:[%s379 + $0x18] sm:$0xff] %v912
        %s917 = sand.u32 %s205, 1
        %s918 = sand.u32 %s205, 1
        %s919 = smul.addr %s918, 32
        %s920 = scalar_lea.vmem [#allocation4], %s919
        // Predicated region
        $region99: #{td_shaper_forward.1} parent=89 // pred_check
          %p921 = pneg %p215
        $region100: #{td_shaper_forward.1} parent=89 // pred_check_branch
          %923 = sbr.rel (%p921) target = $region102
        $region101: #{td_shaper_forward.1} parent=89 // pred_region
          %s924 = smul.u32 2, %s19
          %s925 = smul.addr %s924, 8
          %s926 = scalar_lea.vmem %s8, %s925
          // Predicated region
          $region103: #{td_shaper_forward.1} parent=101 // pred_check
            _
          $region104: #{td_shaper_forward.1} parent=101 // pred_check_branch
            %928 = sbr.rel (0) target = $region106
          $region105: #{td_shaper_forward.1} parent=101 // pred_region
            // Predicated region
            $region107: #{td_shaper_forward.1} parent=105 // pred_check
              _
            $region108: #{td_shaper_forward.1} parent=105 // pred_check_branch
              %930 = sbr.rel (0) target = $region110
            $region109: #{td_shaper_forward.1} parent=105 // pred_region
              loop: start=0, step=1, limit=1
              $region111: #{td_shaper_forward.1} parent=109 // loop_pre_header
                _
              $region112: #{td_shaper_forward.1} parent=109 // loop_header
                %s932 = sphi 0, %s936
                %p933 = scmp.ge.s32.totalorder %s932, 1
                %s937 = sphi %s920, %s920
                %s938 = sphi %s926, %s926
              $region113: #{td_shaper_forward.1} parent=109 // loop_header_branch
                %935 = sbr.rel (%p933) target = $region117
              $region114: #{td_shaper_forward.1} parent=109 // loop_body
                %v939 = vld [vmem:[%s937] sm:$0xff]
                %940 = vst [vmem:[%s938] sm:$0xff] %v939
                %v941 = vld [vmem:[%s937 + $0x8] sm:$0xff]
                %942 = vst [vmem:[%s938 + $0x8] sm:$0xff] %v941
                %v943 = vld [vmem:[%s937 + $0x10] sm:$0xff]
                %944 = vst [vmem:[%s938 + $0x20] sm:$0xff] %v943
                %v945 = vld [vmem:[%s937 + $0x18] sm:$0xff]
                %946 = vst [vmem:[%s938 + $0x28] sm:$0xff] %v945
              $region115: #{td_shaper_forward.1} parent=109 // loop_footer
                %s936 = sadd.s32 1, %s932
              $region116: #{td_shaper_forward.1} parent=109 // loop_footer_branch
                %931 = sbr.rel target = $region112
              $region117: #{td_shaper_forward.1} parent=109 // loop_exit
                _
            $region110: #{td_shaper_forward.1} parent=105 // pred_fallthru
              _
            // Predicated region
            $region118: #{td_shaper_forward.1} parent=105 // pred_check
              _
            $region119: #{td_shaper_forward.1} parent=105 // pred_check_branch
              %948 = sbr.rel target = $region121
            $region120: #{td_shaper_forward.1} parent=105 // pred_region
              _
            $region121: #{td_shaper_forward.1} parent=105 // pred_fallthru
              _
          $region106: #{td_shaper_forward.1} parent=101 // pred_fallthru
            _
          %949 = vnop
        $region102: #{td_shaper_forward.1} parent=89 // pred_fallthru
          _
      $region90: #{td_shaper_forward.1} parent=5 // pred_fallthru
        _
      %p950 = scmp.le.s32.totalorder 2, %s14
      // Predicated region
      $region122: #{td_shaper_forward.1} parent=5 // pred_check
        %p951 = pneg %p950
      $region123: #{td_shaper_forward.1} parent=5 // pred_check_branch
        %953 = sbr.rel (%p951) target = $region125
      $region124: #{td_shaper_forward.1} parent=5 // pred_region
        %s954 = ssub.s32 %s14, 2
        // Predicated region
        $region126: #{td_shaper_forward.1} parent=124 // pred_check
          %p955 = pneg %p221
        $region127: #{td_shaper_forward.1} parent=124 // pred_check_branch
          %957 = sbr.rel (%p955) target = $region129
        $region128: #{td_shaper_forward.1} parent=124 // pred_region
          %s958 = sand.u32 %s206, 1
          %s959 = sand.u32 %s206, 1
          %s960 = smul.addr %s959, 32
          %s961 = scalar_lea.vmem [#allocation4], %s960
        $region129: #{td_shaper_forward.1} parent=124 // pred_fallthru
          _
      $region125: #{td_shaper_forward.1} parent=5 // pred_fallthru
        _
    $region6: #{td_shaper_forward.1} parent=1 // loop_footer
      %s18 = sadd.s32 1, %s14
    $region7: #{td_shaper_forward.1} parent=1 // loop_footer_branch
      %13 = sbr.rel target = $region3
    $region8: #{td_shaper_forward.1} parent=1 // loop_exit
      _

</llo_original>
